<compile_context>
chip_gen: v6e
topology: v6e:2x2x1
jax: 0.10.0
libtpu: 0.0.40
codegen_flags: <defaults>
</compile_context>

<pallas_src>
import functools

import jax
import jax.numpy as jnp
import numpy as np
from jax.experimental import pallas as pl
from jax.experimental.pallas import tpu as pltpu

C_IN = 4
C_OUT = 4
KH = KW = 3
NTAP = KH * KW          # 9 conv taps
KP = 40                 # packed contraction length: 4 blocks of (tap pair) + 1 block of (tap 8 + zeros)


def conv_slice_kernel(x_ref, w_ref, b_ref, m_ref, o1_ref, o2_ref, *, n, h, w):
    """x_ref : (2*C_IN, N*H*W)  lane-dense channel-major input; rows 4:8 duplicate rows 0:4
       w_ref : (C_OUT, KP)      packed per-tap weights (see _packed_weights)
       b_ref : (C_OUT, 1)       bias
       m_ref : (KP, N*H*W)      0/1 border/bleed/wrap masks matching the packed K layout
       o1_ref: (N, 2, H*W)      conv output channels 0:2  (slice1)
       o2_ref: (N, 2, H*W)      conv output channels 2:4  (slice2)
    """
    hw = h * w
    nhw = n * hw
    xv = x_ref[...]                                        # (8, nhw)

    def tap(k):                                            # shifted view for 3x3 tap k
        off = (k // KW - 1) * w + (k % KW - 1)             # dy*W + dx
        if off == 0:
            return xv
        # XLU lane rotation; wrapped lanes are zeroed by the masks below.
        return pltpu.roll(xv, (-off) % nhw, axis=1)

    # Pack taps in pairs along sublanes: block j rows 0:4 = tap 2j, rows 4:8 = tap 2j+1.
    top = jax.lax.broadcasted_iota(jnp.int32, (2 * C_IN, nhw), 0) < C_IN
    blocks = [jnp.where(top, tap(2 * j), tap(2 * j + 1)) for j in range(NTAP // 2)]
    blocks.append(tap(NTAP - 1))                           # rows 4:8 killed by zero mask + zero weights
    rhs = jnp.concatenate(blocks, axis=0) * m_ref[...]     # (KP, nhw); borders / bleed / wrap -> 0

    # Single fused MXU matmul + bias (f32 accumulate).
    out = jnp.dot(w_ref[...], rhs, preferred_element_type=jnp.float32) + b_ref[...]   # (C_OUT, nhw)

    # Emit the two channel slices directly in (N, 2, H*W) layout (lane-dense stores,
    # H*W is a multiple of 128 here).
    for i in range(n):
        o1_ref[i] = out[0:2, i * hw:(i + 1) * hw]
        o2_ref[i] = out[2:4, i * hw:(i + 1) * hw]


def _packed_masks(n, h, w):
    """0/1 masks per packed K row, shape (KP, n*h*w). Pure numpy (static shapes)."""
    f = np.arange(n * h * w)
    col = f % w
    row = (f // w) % h
    m9 = np.zeros((NTAP, n * h * w), np.float32)
    for kh in range(KH):
        for kw in range(KW):
            dy, dx = kh - 1, kw - 1
            ok = (row + dy >= 0) & (row + dy < h) & (col + dx >= 0) & (col + dx < w)
            m9[kh * KW + kw] = ok.astype(np.float32)
    mk = np.zeros((KP, n * h * w), np.float32)
    for j in range(NTAP // 2):
        mk[8 * j:8 * j + C_IN] = m9[2 * j]
        mk[8 * j + C_IN:8 * j + 2 * C_IN] = m9[2 * j + 1]
    mk[32:32 + C_IN] = m9[NTAP - 1]                        # rows 36:40 stay 0
    return mk


def _packed_weights(weight):
    """(C_OUT, C_IN, KH, KW) -> (C_OUT, KP) matching the kernel's packed K layout."""
    wt = jnp.transpose(weight, (2, 3, 0, 1)).reshape(NTAP, C_OUT, C_IN)    # wt[k, co, ci]
    lhs = jnp.zeros((C_OUT, KP), jnp.float32)
    for j in range(NTAP // 2):
        lhs = lhs.at[:, 8 * j:8 * j + C_IN].set(wt[2 * j])
        lhs = lhs.at[:, 8 * j + C_IN:8 * j + 2 * C_IN].set(wt[2 * j + 1])
    lhs = lhs.at[:, 32:32 + C_IN].set(wt[NTAP - 1])                        # cols 36:40 stay 0
    return lhs


def model_forward(x, weight, bias):
    """x: (N, 4, H, W) f32 NCHW.  Returns (y[:, 0:2], y[:, 2:4]) with y = conv2d(x) + b."""
    N, C, H, W = x.shape
    assert C == C_IN
    HW, NHW = H * W, N * H * W

    # Lane-dense channel-major input (flat index = n*H*W + y*W + x), duplicated along
    # sublanes so each packed 8-row K-block can hold two taps.
    # For large N, keep activations in this layout across the model (or grid over N)
    # to remove this transpose entirely — at this size it is an 8 KiB copy.
    x_flat = jnp.transpose(x, (1, 0, 2, 3)).reshape(C_IN, NHW)
    x2 = jnp.concatenate([x_flat, x_flat], axis=0)                          # (8, NHW)

    vmem = pl.BlockSpec(memory_space=pltpu.MemorySpace.VMEM)
    o1, o2 = pl.pallas_call(
        functools.partial(conv_slice_kernel, n=N, h=H, w=W),
        out_shape=(jax.ShapeDtypeStruct((N, 2, HW), jnp.float32),
                   jax.ShapeDtypeStruct((N, 2, HW), jnp.float32)),
        in_specs=[vmem, vmem, vmem, vmem],
        out_specs=(vmem, vmem),
    )(x2, _packed_weights(weight), bias.reshape(C_OUT, 1).astype(jnp.float32),
      jnp.asarray(_packed_masks(N, H, W)))

    # (N, 2, H*W) -> (N, 2, H, W): contiguous reshape, no copy / no transpose needed.
    return o1.reshape(N, 2, H, W), o2.reshape(N, 2, H, W)


def init_params(key):
    kw_, kb_ = jax.random.split(key)
    # kaiming_normal_(mode='fan_out', nonlinearity='relu'): std = sqrt(2 / fan_out)
    fan_out = C_OUT * KH * KW
    std = np.sqrt(2.0 / fan_out)
    w = jax.random.normal(kw_, (C_OUT, C_IN, KH, KW), dtype=jnp.float32) * std
    # default Conv2d bias init: uniform(-1/sqrt(fan_in), 1/sqrt(fan_in))
    fan_in = C_IN * KH * KW
    bound = 1.0 / np.sqrt(fan_in)
    b = jax.random.uniform(kb_, (C_OUT,), dtype=jnp.float32, minval=-bound, maxval=bound)
    return w, b


if __name__ == "__main__":
    key = jax.random.PRNGKey(0)
    kx, kp = jax.random.split(key)
    N, H, W = 2, 16, 16
    x = jax.random.normal(kx, (N, C_IN, H, W), dtype=jnp.float32)
    w, b = init_params(kp)

    fwd = jax.jit(model_forward)
    s1, s2 = fwd(x, w, b)
    s1 = jax.block_until_ready(s1)
    s2 = jax.block_until_ready(s2)

    # Sanity check against XLA's conv.
    ref = jax.lax.conv_general_dilated(
        x, w, window_strides=(1, 1), padding=((1, 1), (1, 1)),
        dimension_numbers=("NCHW", "OIHW", "NCHW"),
    ) + b[None, :, None, None]
    np.testing.assert_allclose(np.asarray(s1), np.asarray(ref[:, 0:2]), rtol=1e-4, atol=1e-4)
    np.testing.assert_allclose(np.asarray(s2), np.asarray(ref[:, 2:4]), rtol=1e-4, atol=1e-4)

    print("KERNEL_OK")
</pallas_src>

<mosaic_0001>
module attributes {stable_mosaic.version = 11 : i64} {
  func.func @conv_slice_kernel(%arg0: memref<8x512xf32, #tpu.memory_space<vmem>>, %arg1: memref<4x40xf32, #tpu.memory_space<vmem>>, %arg2: memref<4x1xf32, #tpu.memory_space<vmem>>, %arg3: memref<40x512xf32, #tpu.memory_space<vmem>>, %arg4: memref<2x2x256xf32, #tpu.memory_space<vmem>>, %arg5: memref<2x2x256xf32, #tpu.memory_space<vmem>>) attributes {dimension_semantics = [], scalar_prefetch = 0 : i64, scratch_operands = 0 : i64, tpu.core_type = #tpu.core_type<tc>} {
    %c0 = arith.constant 0 : index
    %c0_0 = arith.constant 0 : index
    %0 = vector.load %arg0[%c0, %c0_0] : memref<8x512xf32, #tpu.memory_space<vmem>>, vector<8x512xf32>
    %1 = tpu.iota {dimensions = array<i32: 0>} : vector<8x512xi32>
    %c4_i32 = arith.constant 4 : i32
    %2 = vector.broadcast %c4_i32 : i32 to vector<8x512xi32>
    %3 = arith.cmpi slt, %1, %2 : vector<8x512xi32>
    %c17_i32 = arith.constant 17 : i32
    %4 = tpu.dynamic_rotate %0 by %c17_i32 dim 1 : vector<8x512xf32>, i32 -> vector<8x512xf32>
    %c16_i32 = arith.constant 16 : i32
    %5 = tpu.dynamic_rotate %0 by %c16_i32 dim 1 : vector<8x512xf32>, i32 -> vector<8x512xf32>
    %6 = arith.select %3, %4, %5 : vector<8x512xi1>, vector<8x512xf32>
    %c15_i32 = arith.constant 15 : i32
    %7 = tpu.dynamic_rotate %0 by %c15_i32 dim 1 : vector<8x512xf32>, i32 -> vector<8x512xf32>
    %c1_i32 = arith.constant 1 : i32
    %8 = tpu.dynamic_rotate %0 by %c1_i32 dim 1 : vector<8x512xf32>, i32 -> vector<8x512xf32>
    %9 = arith.select %3, %7, %8 : vector<8x512xi1>, vector<8x512xf32>
    %c511_i32 = arith.constant 511 : i32
    %10 = tpu.dynamic_rotate %0 by %c511_i32 dim 1 : vector<8x512xf32>, i32 -> vector<8x512xf32>
    %11 = arith.select %3, %0, %10 : vector<8x512xi1>, vector<8x512xf32>
    %c497_i32 = arith.constant 497 : i32
    %12 = tpu.dynamic_rotate %0 by %c497_i32 dim 1 : vector<8x512xf32>, i32 -> vector<8x512xf32>
    %c496_i32 = arith.constant 496 : i32
    %13 = tpu.dynamic_rotate %0 by %c496_i32 dim 1 : vector<8x512xf32>, i32 -> vector<8x512xf32>
    %14 = arith.select %3, %12, %13 : vector<8x512xi1>, vector<8x512xf32>
    %c495_i32 = arith.constant 495 : i32
    %15 = tpu.dynamic_rotate %0 by %c495_i32 dim 1 : vector<8x512xf32>, i32 -> vector<8x512xf32>
    %16 = tpu.concatenate %6, %9, %11, %14, %15 in 0 : vector<8x512xf32>, vector<8x512xf32>, vector<8x512xf32>, vector<8x512xf32>, vector<8x512xf32> -> vector<40x512xf32>
    %c0_1 = arith.constant 0 : index
    %c0_2 = arith.constant 0 : index
    %17 = vector.load %arg3[%c0_1, %c0_2] : memref<40x512xf32, #tpu.memory_space<vmem>>, vector<40x512xf32>
    %18 = arith.mulf %16, %17 : vector<40x512xf32>
    %c0_3 = arith.constant 0 : index
    %c0_4 = arith.constant 0 : index
    %19 = vector.load %arg1[%c0_3, %c0_4] : memref<4x40xf32, #tpu.memory_space<vmem>>, vector<4x40xf32>
    %cst = arith.constant dense<0.000000e+00> : vector<4x512xf32>
    %20 = tpu.matmul %19, %18, %cst {dimension_numbers = #tpu.dot_dimension_numbers<[1], [0], [0], [1], [0, 0, 1, 1], [], []>} : vector<4x40xf32>, vector<40x512xf32>, vector<4x512xf32> -> vector<4x512xf32>
    %c0_5 = arith.constant 0 : index
    %c0_6 = arith.constant 0 : index
    %21 = vector.load %arg2[%c0_5, %c0_6] : memref<4x1xf32, #tpu.memory_space<vmem>>, vector<4x1xf32>
    %22 = vector.broadcast %21 : vector<4x1xf32> to vector<4x512xf32>
    %23 = arith.addf %20, %22 : vector<4x512xf32>
    %24 = vector.extract_strided_slice %23 {offsets = [0, 0], sizes = [2, 256], strides = [1, 1]} : vector<4x512xf32> to vector<2x256xf32>
    %c0_7 = arith.constant 0 : index
    %c0_8 = arith.constant 0 : index
    %c0_9 = arith.constant 0 : index
    %25 = vector.load %arg4[%c0_7, %c0_8, %c0_9] : memref<2x2x256xf32, #tpu.memory_space<vmem>>, vector<1x2x256xf32>
    %26 = vector.shape_cast %25 : vector<1x2x256xf32> to vector<2x256xf32>
    %27 = vector.shape_cast %24 : vector<2x256xf32> to vector<1x2x256xf32>
    tpu.vector_store %arg4[%c0_7, %c0_8, %c0_9], %27 {strides = array<i32>} : memref<2x2x256xf32, #tpu.memory_space<vmem>>, vector<1x2x256xf32>,
    %28 = vector.extract_strided_slice %23 {offsets = [2, 0], sizes = [2, 256], strides = [1, 1]} : vector<4x512xf32> to vector<2x256xf32>
    %c0_10 = arith.constant 0 : index
    %c0_11 = arith.constant 0 : index
    %c0_12 = arith.constant 0 : index
    %29 = vector.load %arg5[%c0_10, %c0_11, %c0_12] : memref<2x2x256xf32, #tpu.memory_space<vmem>>, vector<1x2x256xf32>
    %30 = vector.shape_cast %29 : vector<1x2x256xf32> to vector<2x256xf32>
    %31 = vector.shape_cast %28 : vector<2x256xf32> to vector<1x2x256xf32>
    tpu.vector_store %arg5[%c0_10, %c0_11, %c0_12], %31 {strides = array<i32>} : memref<2x2x256xf32, #tpu.memory_space<vmem>>, vector<1x2x256xf32>,
    %32 = vector.extract_strided_slice %23 {offsets = [0, 256], sizes = [2, 256], strides = [1, 1]} : vector<4x512xf32> to vector<2x256xf32>
    %c1 = arith.constant 1 : index
    %c0_13 = arith.constant 0 : index
    %c0_14 = arith.constant 0 : index
    %33 = vector.load %arg4[%c1, %c0_13, %c0_14] : memref<2x2x256xf32, #tpu.memory_space<vmem>>, vector<1x2x256xf32>
    %34 = vector.shape_cast %33 : vector<1x2x256xf32> to vector<2x256xf32>
    %35 = vector.shape_cast %32 : vector<2x256xf32> to vector<1x2x256xf32>
    tpu.vector_store %arg4[%c1, %c0_13, %c0_14], %35 {strides = array<i32>} : memref<2x2x256xf32, #tpu.memory_space<vmem>>, vector<1x2x256xf32>,
    %36 = vector.extract_strided_slice %23 {offsets = [2, 256], sizes = [2, 256], strides = [1, 1]} : vector<4x512xf32> to vector<2x256xf32>
    %c1_15 = arith.constant 1 : index
    %c0_16 = arith.constant 0 : index
    %c0_17 = arith.constant 0 : index
    %37 = vector.load %arg5[%c1_15, %c0_16, %c0_17] : memref<2x2x256xf32, #tpu.memory_space<vmem>>, vector<1x2x256xf32>
    %38 = vector.shape_cast %37 : vector<1x2x256xf32> to vector<2x256xf32>
    %39 = vector.shape_cast %36 : vector<2x256xf32> to vector<1x2x256xf32>
    tpu.vector_store %arg5[%c1_15, %c0_16, %c0_17], %39 {strides = array<i32>} : memref<2x2x256xf32, #tpu.memory_space<vmem>>, vector<1x2x256xf32>,
    return
  }
}

</mosaic_0001>

<llo_original>
// kernel: model_forward.1
$region0: #{model_forward.1}
  #allocation0 [shape = 'u32[]', space=smem, size = 0x4, offset = 0x4, fixed_abs, tag = 'smem constant byte address 0x4 - core index']
  #allocation1 [shape = 'u32[144,128]{1,0:T(1,128)}', space=vmem, size = 0x12000, scoped, tag = 'internal scratch']
  %s0 = inlined_call_operand.vmem [shape: f32[8,512], index: 0, kind: input, shape index: {}]
  %s1 = inlined_call_operand.vmem [shape: f32[4,40], index: 1, kind: input, shape index: {}]
  %s2 = inlined_call_operand.vmem [shape: f32[4,1], index: 2, kind: input, shape index: {}]
  %s3 = inlined_call_operand.vmem [shape: f32[40,512], index: 3, kind: input, shape index: {}]
  %s4 = inlined_call_operand.vmem [shape: f32[2,2,256], index: 4, kind: output, shape index: {0}]
  %s5 = inlined_call_operand.vmem [shape: f32[2,2,256], index: 5, kind: output, shape index: {1}]
  %6 = xla_tuple %s4, %s5
  %s7 = sld [smem:[#allocation0]]
  $region34: #{model_forward.1} parent=0
    _
  %s9 = ssub.s32 1, %s7
  %s10 = scalar_select 0, %s9, %s7
  // Predicated region
  $region2: #{model_forward.1} parent=0 // pred_check
    _
  $region3: #{model_forward.1} parent=0 // pred_check_branch
    %12 = sbr.rel (0) target = $region5
  $region4: #{model_forward.1} parent=0 // pred_region
    _
  $region5: #{model_forward.1} parent=0 // pred_fallthru
    _
  // Predicated region
  $region6: #{model_forward.1} parent=0 // pred_check
    _
  $region7: #{model_forward.1} parent=0 // pred_check_branch
    %14 = sbr.rel (0) target = $region9
  $region8: #{model_forward.1} parent=0 // pred_region
    _
  $region9: #{model_forward.1} parent=0 // pred_fallthru
    _
  // Predicated region
  $region10: #{model_forward.1} parent=0 // pred_check
    _
  $region11: #{model_forward.1} parent=0 // pred_check_branch
    %16 = sbr.rel (0) target = $region13
  $region12: #{model_forward.1} parent=0 // pred_region
    _
  $region13: #{model_forward.1} parent=0 // pred_fallthru
    _
  // Predicated region
  $region14: #{model_forward.1} parent=0 // pred_check
    _
  $region15: #{model_forward.1} parent=0 // pred_check_branch
    %18 = sbr.rel (0) target = $region17
  $region16: #{model_forward.1} parent=0 // pred_region
    _
  $region17: #{model_forward.1} parent=0 // pred_fallthru
    _
  %v19 = vld [vmem:[%s0] sm:$0xff]
  %v20 = vld [vmem:[%s0 + $0x8] sm:$0xff]
  %v21 = vld [vmem:[%s0 + $0x10] sm:$0xff]
  %v22 = vld [vmem:[%s0 + $0x18] sm:$0xff]
  %v23 = vlaneseq
  %v24 = vshrl.u32 %v23, 7
  %vm25 = vcmp.lt.s32.totalorder %v24, 4
  %26 = vrot.lane.b32.xlu0 %v19, 17
  %v27 = vpop.permute.xlu0 %26
  %28 = vrot.lane.b32.xlu0 %v20, 17
  %v29 = vpop.permute.xlu0 %28
  %30 = vrot.lane.b32.xlu0 %v21, 17
  %v31 = vpop.permute.xlu0 %30
  %32 = vrot.lane.b32.xlu0 %v22, 17
  %v33 = vpop.permute.xlu0 %32
  %v34 = vlaneseq
  %v35 = vand.u32 %v34, 127
  %vm36 = vcmp.lt.s32.totalorder %v35, 17
  %v37 = vsel %vm36, %v31, %v33
  %v38 = vsel %vm36, %v29, %v31
  %v39 = vsel %vm36, %v27, %v29
  %v40 = vsel %vm36, %v33, %v27
  %41 = vrot.lane.b32.xlu0 %v19, 16
  %v42 = vpop.permute.xlu0 %41
  %43 = vrot.lane.b32.xlu0 %v20, 16
  %v44 = vpop.permute.xlu0 %43
  %45 = vrot.lane.b32.xlu0 %v21, 16
  %v46 = vpop.permute.xlu0 %45
  %47 = vrot.lane.b32.xlu0 %v22, 16
  %v48 = vpop.permute.xlu0 %47
  %vm49 = vcmp.lt.s32.totalorder %v35, 16
  %v50 = vsel %vm49, %v46, %v48
  %v51 = vsel %vm49, %v44, %v46
  %v52 = vsel %vm49, %v42, %v44
  %v53 = vsel %vm49, %v48, %v42
  %v54 = vsel %vm25, %v40, %v53
  %v55 = vsel %vm25, %v39, %v52
  %v56 = vsel %vm25, %v38, %v51
  %v57 = vsel %vm25, %v37, %v50
  %58 = vrot.lane.b32.xlu0 %v19, 15
  %v59 = vpop.permute.xlu0 %58
  %60 = vrot.lane.b32.xlu0 %v20, 15
  %v61 = vpop.permute.xlu0 %60
  %62 = vrot.lane.b32.xlu0 %v21, 15
  %v63 = vpop.permute.xlu0 %62
  %64 = vrot.lane.b32.xlu0 %v22, 15
  %v65 = vpop.permute.xlu0 %64
  %vm66 = vcmp.lt.s32.totalorder %v35, 15
  %v67 = vsel %vm66, %v63, %v65
  %v68 = vsel %vm66, %v61, %v63
  %v69 = vsel %vm66, %v59, %v61
  %v70 = vsel %vm66, %v65, %v59
  %71 = vrot.lane.b32.xlu0 %v19, 1
  %v72 = vpop.permute.xlu0 %71
  %73 = vrot.lane.b32.xlu0 %v20, 1
  %v74 = vpop.permute.xlu0 %73
  %75 = vrot.lane.b32.xlu0 %v21, 1
  %v76 = vpop.permute.xlu0 %75
  %77 = vrot.lane.b32.xlu0 %v22, 1
  %v78 = vpop.permute.xlu0 %77
  %vm79 = vcmp.lt.s32.totalorder %v35, 1
  %v80 = vsel %vm79, %v76, %v78
  %v81 = vsel %vm79, %v74, %v76
  %v82 = vsel %vm79, %v72, %v74
  %v83 = vsel %vm79, %v78, %v72
  %v84 = vsel %vm25, %v70, %v83
  %v85 = vsel %vm25, %v69, %v82
  %v86 = vsel %vm25, %v68, %v81
  %v87 = vsel %vm25, %v67, %v80
  %88 = vrot.lane.b32.xlu0 %v19, 127
  %v89 = vpop.permute.xlu0 %88
  %90 = vrot.lane.b32.xlu0 %v20, 127
  %v91 = vpop.permute.xlu0 %90
  %92 = vrot.lane.b32.xlu0 %v21, 127
  %v93 = vpop.permute.xlu0 %92
  %94 = vrot.lane.b32.xlu0 %v22, 127
  %v95 = vpop.permute.xlu0 %94
  %vm96 = vcmp.lt.s32.totalorder %v35, 127
  %v97 = vsel %vm96, %v93, %v95
  %v98 = vsel %vm96, %v91, %v93
  %v99 = vsel %vm96, %v89, %v91
  %v100 = vsel %vm96, %v95, %v89
  %v101 = vsel %vm25, %v19, %v99
  %v102 = vsel %vm25, %v20, %v98
  %v103 = vsel %vm25, %v21, %v97
  %v104 = vsel %vm25, %v22, %v100
  %105 = vrot.lane.b32.xlu0 %v19, 113
  %v106 = vpop.permute.xlu0 %105
  %107 = vrot.lane.b32.xlu0 %v20, 113
  %v108 = vpop.permute.xlu0 %107
  %109 = vrot.lane.b32.xlu0 %v21, 113
  %v110 = vpop.permute.xlu0 %109
  %111 = vrot.lane.b32.xlu0 %v22, 113
  %v112 = vpop.permute.xlu0 %111
  %vm113 = vcmp.lt.s32.totalorder %v35, 113
  %v114 = vsel %vm113, %v110, %v112
  %v115 = vsel %vm113, %v108, %v110
  %v116 = vsel %vm113, %v106, %v108
  %v117 = vsel %vm113, %v112, %v106
  %118 = vrot.lane.b32.xlu0 %v19, 112
  %v119 = vpop.permute.xlu0 %118
  %120 = vrot.lane.b32.xlu0 %v20, 112
  %v121 = vpop.permute.xlu0 %120
  %122 = vrot.lane.b32.xlu0 %v21, 112
  %v123 = vpop.permute.xlu0 %122
  %124 = vrot.lane.b32.xlu0 %v22, 112
  %v125 = vpop.permute.xlu0 %124
  %vm126 = vcmp.lt.s32.totalorder %v35, 112
  %v127 = vsel %vm126, %v123, %v125
  %v128 = vsel %vm126, %v121, %v123
  %v129 = vsel %vm126, %v119, %v121
  %v130 = vsel %vm126, %v125, %v119
  %v131 = vsel %vm25, %v116, %v129
  %v132 = vsel %vm25, %v115, %v128
  %v133 = vsel %vm25, %v114, %v127
  %v134 = vsel %vm25, %v117, %v130
  %135 = vrot.lane.b32.xlu0 %v19, 111
  %v136 = vpop.permute.xlu0 %135
  %137 = vrot.lane.b32.xlu0 %v20, 111
  %v138 = vpop.permute.xlu0 %137
  %139 = vrot.lane.b32.xlu0 %v21, 111
  %v140 = vpop.permute.xlu0 %139
  %141 = vrot.lane.b32.xlu0 %v22, 111
  %v142 = vpop.permute.xlu0 %141
  %vm143 = vcmp.lt.s32.totalorder %v35, 111
  %v144 = vsel %vm143, %v140, %v142
  %v145 = vsel %vm143, %v138, %v140
  %v146 = vsel %vm143, %v136, %v138
  %v147 = vsel %vm143, %v142, %v136
  %v148 = vld [vmem:[%s3] sm:$0xff]
  %v149 = vld [vmem:[%s3 + $0x8] sm:$0xff]
  %v150 = vld [vmem:[%s3 + $0x10] sm:$0xff]
  %v151 = vld [vmem:[%s3 + $0x18] sm:$0xff]
  %v152 = vld [vmem:[%s3 + $0x20] sm:$0xff]
  %v153 = vld [vmem:[%s3 + $0x28] sm:$0xff]
  %v154 = vld [vmem:[%s3 + $0x30] sm:$0xff]
  %v155 = vld [vmem:[%s3 + $0x38] sm:$0xff]
  %v156 = vld [vmem:[%s3 + $0x40] sm:$0xff]
  %v157 = vld [vmem:[%s3 + $0x48] sm:$0xff]
  %v158 = vld [vmem:[%s3 + $0x50] sm:$0xff]
  %v159 = vld [vmem:[%s3 + $0x58] sm:$0xff]
  %v160 = vld [vmem:[%s3 + $0x60] sm:$0xff]
  %v161 = vld [vmem:[%s3 + $0x68] sm:$0xff]
  %v162 = vld [vmem:[%s3 + $0x70] sm:$0xff]
  %v163 = vld [vmem:[%s3 + $0x78] sm:$0xff]
  %v164 = vld [vmem:[%s3 + $0x80] sm:$0xff]
  %v165 = vld [vmem:[%s3 + $0x88] sm:$0xff]
  %v166 = vld [vmem:[%s3 + $0x90] sm:$0xff]
  %v167 = vld [vmem:[%s3 + $0x98] sm:$0xff]
  %v168 = vmul.f32 %v54, %v148
  %v169 = vmul.f32 %v55, %v149
  %v170 = vmul.f32 %v56, %v150
  %v171 = vmul.f32 %v57, %v151
  %v172 = vmul.f32 %v84, %v152
  %v173 = vmul.f32 %v85, %v153
  %v174 = vmul.f32 %v86, %v154
  %v175 = vmul.f32 %v87, %v155
  %v176 = vmul.f32 %v101, %v156
  %v177 = vmul.f32 %v102, %v157
  %v178 = vmul.f32 %v103, %v158
  %v179 = vmul.f32 %v104, %v159
  %v180 = vmul.f32 %v131, %v160
  %v181 = vmul.f32 %v132, %v161
  %v182 = vmul.f32 %v133, %v162
  %v183 = vmul.f32 %v134, %v163
  %v184 = vmul.f32 %v146, %v164
  %v185 = vmul.f32 %v145, %v165
  %v186 = vmul.f32 %v144, %v166
  %v187 = vmul.f32 %v147, %v167
  %v188 = vld [vmem:[%s1] sm:$0xf]
  %v189 = vld [vmem:[%s2] sm:$0xf]
  %191 = vset.pattern.permute.xlu0 0
  %192 = vperm.xlu0 %191, %v189
  %v193 = vpop.permute.xlu0 %192
  %vm195 = vcmask 326656
  %v197 = vsel %vm195, %v188, 0
  %199 = vmatprep.subr.mxu0 0.0
  %200 = vmatpush1.msra.mxu0 0.0
  %201 = vmatprep.subr.mxu0 0.0
  %202 = vmatpush1.msra.mxu0 0.0
  %203 = vmatprep.subr.mxu0 0.0
  %204 = vmatpush1.msra.mxu0 0.0
  %205 = vmatprep.subr.mxu0 0.0
  %206 = vmatpush1.msra.mxu0 0.0
  %207 = vmatprep.subr.mxu0 0.0
  %208 = vmatpush1.msra.mxu0 0.0
  %209 = vmatprep.subr.mxu0 0.0
  %210 = vmatpush1.msra.mxu0 0.0
  %211 = vmatprep.subr.mxu0 0.0
  %212 = vmatpush1.msra.mxu0 0.0
  %213 = vmatprep.subr.mxu0 0.0
  %214 = vmatpush1.msra.mxu0 0.0
  %215 = vmatprep.subr.mxu0 0.0
  %216 = vmatpush1.msra.mxu0 0.0
  %217 = vmatprep.subr.mxu0 0.0
  %218 = vmatpush1.msra.mxu0 0.0
  %219 = vmatprep.subr.mxu0 0.0
  %220 = vmatpush1.msra.mxu0 0.0
  %221 = vmatprep.subr.mxu0 %v185
  %222 = vmatpush1.msra.mxu0 %v184
  %223 = vmatprep.subr.mxu0 %v181
  %224 = vmatpush1.msra.mxu0 %v180
  %225 = vmatprep.subr.mxu0 %v177
  %226 = vmatpush1.msra.mxu0 %v176
  %227 = vmatprep.subr.mxu0 %v173
  %228 = vmatpush1.msra.mxu0 %v172
  %229 = vmatprep.subr.mxu0 %v169
  %230 = vmatpush1.msra.mxu0 %v168
  %231 = vmatprep.subr.mxu0 0.0
  %232 = vmatpush2.msra.mxu0 0.0
  %233 = vmatprep.subr.mxu0 0.0
  %234 = vmatpush2.msra.mxu0 0.0
  %235 = vmatprep.subr.mxu0 0.0
  %236 = vmatpush2.msra.mxu0 0.0
  %237 = vmatprep.subr.mxu0 0.0
  %238 = vmatpush2.msra.mxu0 0.0
  %239 = vmatprep.subr.mxu0 0.0
  %240 = vmatpush2.msra.mxu0 0.0
  %241 = vmatprep.subr.mxu0 0.0
  %242 = vmatpush2.msra.mxu0 0.0
  %243 = vmatprep.subr.mxu0 0.0
  %244 = vmatpush2.msra.mxu0 0.0
  %245 = vmatprep.subr.mxu0 0.0
  %246 = vmatpush2.msra.mxu0 0.0
  %247 = vmatprep.subr.mxu0 0.0
  %248 = vmatpush2.msra.mxu0 0.0
  %249 = vmatprep.subr.mxu0 0.0
  %250 = vmatpush2.msra.mxu0 0.0
  %251 = vmatprep.subr.mxu0 0.0
  %252 = vmatpush2.msra.mxu0 0.0
  %253 = vmatprep.subr.mxu0 0.0
  %254 = vmatpush2.msra.mxu0 0.0
  %255 = vmatprep.subr.mxu0 0.0
  %256 = vmatpush2.msra.mxu0 0.0
  %257 = vmatprep.subr.mxu0 0.0
  %258 = vmatpush2.msra.mxu0 0.0
  %259 = vmatprep.subr.mxu0 0.0
  %260 = vmatpush2.msra.mxu0 0.0
  %261 = vmatprep.subr.mxu0 0.0
  %262 = vmatpush2.msra.mxu0 0.0
  %263 = vmatprep.mubr.f32.mxu0 0.0
  %264 = vmatmul.mubr.f32.gmra.mxu0 %v197
  %v265 = vpop.f32.mrf.mxu0
  %v266 = vadd.f32 %v193, %v265
  %v267 = vpop.f32.mrf.mxu0
  %v268 = vadd.f32 %v193, %v267
  %269 = vdwg.mxu0
  %270 = vmatprep.subr.mxu0 0.0
  %271 = vmatpush1.msra.mxu0 0.0
  %272 = vmatprep.subr.mxu0 0.0
  %273 = vmatpush1.msra.mxu0 0.0
  %274 = vmatprep.subr.mxu0 0.0
  %275 = vmatpush1.msra.mxu0 0.0
  %276 = vmatprep.subr.mxu0 0.0
  %277 = vmatpush1.msra.mxu0 0.0
  %278 = vmatprep.subr.mxu0 0.0
  %279 = vmatpush1.msra.mxu0 0.0
  %280 = vmatprep.subr.mxu0 0.0
  %281 = vmatpush1.msra.mxu0 0.0
  %282 = vmatprep.subr.mxu0 0.0
  %283 = vmatpush1.msra.mxu0 0.0
  %284 = vmatprep.subr.mxu0 0.0
  %285 = vmatpush1.msra.mxu0 0.0
  %286 = vmatprep.subr.mxu0 0.0
  %287 = vmatpush1.msra.mxu0 0.0
  %288 = vmatprep.subr.mxu0 0.0
  %289 = vmatpush1.msra.mxu0 0.0
  %290 = vmatprep.subr.mxu0 0.0
  %291 = vmatpush1.msra.mxu0 0.0
  %292 = vmatprep.subr.mxu0 %v187
  %293 = vmatpush1.msra.mxu0 %v186
  %294 = vmatprep.subr.mxu0 %v183
  %295 = vmatpush1.msra.mxu0 %v182
  %296 = vmatprep.subr.mxu0 %v179
  %297 = vmatpush1.msra.mxu0 %v178
  %298 = vmatprep.subr.mxu0 %v175
  %299 = vmatpush1.msra.mxu0 %v174
  %300 = vmatprep.subr.mxu0 %v171
  %301 = vmatpush1.msra.mxu0 %v170
  %302 = vmatprep.subr.mxu0 0.0
  %303 = vmatpush2.msra.mxu0 0.0
  %304 = vmatprep.subr.mxu0 0.0
  %305 = vmatpush2.msra.mxu0 0.0
  %306 = vmatprep.subr.mxu0 0.0
  %307 = vmatpush2.msra.mxu0 0.0
  %308 = vmatprep.subr.mxu0 0.0
  %309 = vmatpush2.msra.mxu0 0.0
  %310 = vmatprep.subr.mxu0 0.0
  %311 = vmatpush2.msra.mxu0 0.0
  %312 = vmatprep.subr.mxu0 0.0
  %313 = vmatpush2.msra.mxu0 0.0
  %314 = vmatprep.subr.mxu0 0.0
  %315 = vmatpush2.msra.mxu0 0.0
  %316 = vmatprep.subr.mxu0 0.0
  %317 = vmatpush2.msra.mxu0 0.0
  %318 = vmatprep.subr.mxu0 0.0
  %319 = vmatpush2.msra.mxu0 0.0
  %320 = vmatprep.subr.mxu0 0.0
  %321 = vmatpush2.msra.mxu0 0.0
  %322 = vmatprep.subr.mxu0 0.0
  %323 = vmatpush2.msra.mxu0 0.0
  %324 = vmatprep.subr.mxu0 0.0
  %325 = vmatpush2.msra.mxu0 0.0
  %326 = vmatprep.subr.mxu0 0.0
  %327 = vmatpush2.msra.mxu0 0.0
  %328 = vmatprep.subr.mxu0 0.0
  %329 = vmatpush2.msra.mxu0 0.0
  %330 = vmatprep.subr.mxu0 0.0
  %331 = vmatpush2.msra.mxu0 0.0
  %332 = vmatprep.subr.mxu0 0.0
  %333 = vmatpush2.msra.mxu0 0.0
  %334 = vmatprep.mubr.f32.mxu0 0.0
  %335 = vmatmul.mubr.f32.gmra.mxu0 %v197
  %v336 = vpop.f32.mrf.mxu0
  %v337 = vadd.f32 %v193, %v336
  %v338 = vpop.f32.mrf.mxu0
  %v339 = vadd.f32 %v193, %v338
  %340 = vdwg.mxu0
  %v343 = vcombine.low %v266, %v268
  %v345 = vunpack.c.l.s4 1983009808
  %v346 = vunpack.c.0.s8 %v345
  %v347 = vlaneseq
  %v348 = vshrl.u32 %v347, 7
  %v349 = vsub.s32 %v346, %v348
  %v350 = vrot.slane %v343, %v349
  %352 = vst [vmem:[%s4] sm:$0xf] %v350
  %v353 = vcombine.high %v350, %v350
  %355 = vst [vmem:[%s5] sm:$0xf] %v353
  %v358 = vcombine.low %v337, %v339
  %v360 = vunpack.c.l.s4 1983009808
  %v361 = vunpack.c.0.s8 %v360
  %v362 = vlaneseq
  %v363 = vshrl.u32 %v362, 7
  %v364 = vsub.s32 %v361, %v363
  %v365 = vrot.slane %v358, %v364
  %s367 = scalar_lea.vmem %s4, 4
  %368 = vst [vmem:[%s367] sm:$0xf] %v365
  %v369 = vcombine.high %v365, %v365
  %s371 = scalar_lea.vmem %s5, 4
  %372 = vst [vmem:[%s371] sm:$0xf] %v369
  // Predicated region
  $region18: #{model_forward.1} parent=0 // pred_check
    _
  $region19: #{model_forward.1} parent=0 // pred_check_branch
    %374 = sbr.rel (0) target = $region21
  $region20: #{model_forward.1} parent=0 // pred_region
    _
  $region21: #{model_forward.1} parent=0 // pred_fallthru
    _
  // Predicated region
  $region22: #{model_forward.1} parent=0 // pred_check
    _
  $region23: #{model_forward.1} parent=0 // pred_check_branch
    %376 = sbr.rel (0) target = $region25
  $region24: #{model_forward.1} parent=0 // pred_region
    _
  $region25: #{model_forward.1} parent=0 // pred_fallthru
    _
  // Predicated region
  $region26: #{model_forward.1} parent=0 // pred_check
    _
  $region27: #{model_forward.1} parent=0 // pred_check_branch
    %378 = sbr.rel (0) target = $region29
  $region28: #{model_forward.1} parent=0 // pred_region
    _
  $region29: #{model_forward.1} parent=0 // pred_fallthru
    _
  // Predicated region
  $region30: #{model_forward.1} parent=0 // pred_check
    _
  $region31: #{model_forward.1} parent=0 // pred_check_branch
    %380 = sbr.rel (0) target = $region33
  $region32: #{model_forward.1} parent=0 // pred_region
    _
  $region33: #{model_forward.1} parent=0 // pred_fallthru
    _

</llo_original>
